<compile_context>
chip_gen: v7x
topology: tpu7x:2x2x1
jax: 0.10.0
libtpu: 0.0.40
codegen_flags: <defaults>
</compile_context>

<pallas_src>
import numpy as np
import jax
import jax.numpy as jnp
from jax.experimental import pallas as pl
from jax.experimental.pallas import tpu as pltpu

# Model config (d_model % h == 0)
H = 4             # number of heads
D_MODEL = 32      # d_model
D_K = D_MODEL // H
B = 2             # batch
N = 8             # sequence length (number of queries/keys)


def _mha_glu_kernel(qkv_ref, w_qkv_ref, b_qkv_ref, w_gi_ref, b_gi_ref, out_ref):
    d = D_MODEL

    qkv = qkv_ref[...]                                   # [B*N, 3D] f32

    # ---- fused q/k/v projection: one bf16 MXU pass on block-diagonal weight ----
    proj = jnp.dot(qkv.astype(jnp.bfloat16), w_qkv_ref[...],
                   preferred_element_type=jnp.float32) + b_qkv_ref[...]   # [B*N, 3D] f32
    projb = proj.astype(jnp.bfloat16).reshape(B, N, 3 * d)                # [B, N, 3D] bf16

    # ---- multi-head scaled dot attention ----
    # head h of q/k/v is a contiguous dk-wide lane slice of the fused projection.
    scale = 1.0 / np.sqrt(float(D_K))
    head_outs = []
    for h in range(H):
        q_h = projb[..., h * D_K:(h + 1) * D_K]                       # [B,N,dk]
        k_h = projb[..., d + h * D_K: d + (h + 1) * D_K]              # [B,N,dk]
        v_h = projb[..., 2 * d + h * D_K: 2 * d + (h + 1) * D_K]      # [B,N,dk]
        s = jnp.einsum('bnd,bmd->bnm', q_h, k_h,
                       preferred_element_type=jnp.float32) * scale    # [B,N,N] f32
        s = s - jnp.max(s, axis=-1, keepdims=True)
        p = jnp.exp(s)
        p = p * pl.reciprocal(jnp.sum(p, axis=-1, keepdims=True), approx=True)
        head_outs.append(jnp.einsum('bnm,bmd->bnd', p.astype(jnp.bfloat16), v_h,
                                    preferred_element_type=jnp.float32))
    x = jnp.concatenate(head_outs, axis=-1)                           # [B,N,D] f32
    x2 = x.reshape(B * N, d)                                          # [B*N,D] f32

    # ---- fused GLU head: one bf16 MXU pass for [gate|info], then split ----
    query2 = qkv[:, :d]                                               # [B*N,D] f32
    cat = jnp.concatenate([x2, query2], axis=-1)                      # [B*N,2D] f32
    gi = jnp.dot(cat.astype(jnp.bfloat16), w_gi_ref[...],
                 preferred_element_type=jnp.float32) + b_gi_ref[...]  # [B*N,2D] f32
    gate = gi[:, :d]
    info = gi[:, d:]
    out_ref[...] = (jax.nn.sigmoid(gate) * info).astype(out_ref.dtype)


def multi_headed_dot_attention(query, key, value, packed):
    """Fused eval-mode forward. query/key/value: [B,N,D] f32."""
    b, n, d = query.shape
    w_qkv, b_qkv, w_gi, b_gi = packed
    # wrapper-side concat + flatten (hoisted out of the kernel)
    qkv = jnp.concatenate([query, key, value], axis=-1).reshape(b * n, 3 * d)

    vmem = lambda: pl.BlockSpec(memory_space=pltpu.MemorySpace.VMEM)
    out2d = pl.pallas_call(
        _mha_glu_kernel,
        out_shape=jax.ShapeDtypeStruct((b * n, d), query.dtype),
        in_specs=[vmem() for _ in range(5)],
        out_specs=vmem(),
    )(qkv, w_qkv, b_qkv, w_gi, b_gi)
    return out2d.reshape(b, n, d)


def make_params(key):
    """Raw f32 parameters (x @ W + b convention)."""
    ks = jax.random.split(key, 10)
    w = lambda k, shape: (0.1 * jax.random.normal(k, shape)).astype(jnp.float32)
    return {
        'wq': w(ks[0], (D_MODEL, D_MODEL)), 'bq': w(ks[1], (D_MODEL,)),
        'wk': w(ks[2], (D_MODEL, D_MODEL)), 'bk': w(ks[3], (D_MODEL,)),
        'wv': w(ks[4], (D_MODEL, D_MODEL)), 'bv': w(ks[5], (D_MODEL,)),
        'wgate': w(ks[6], (2 * D_MODEL, D_MODEL)), 'bgate': w(ks[7], (D_MODEL,)),
        'winfo': w(ks[8], (2 * D_MODEL, D_MODEL)), 'binfo': w(ks[9], (D_MODEL,)),
    }


def pack_params(params):
    """Host-side weight packing: block-diag q/k/v, fused gate|info, bf16 MXU operands."""
    d = D_MODEL
    w_qkv = jnp.zeros((3 * d, 3 * d), jnp.float32)
    w_qkv = w_qkv.at[0:d, 0:d].set(params['wq'])
    w_qkv = w_qkv.at[d:2 * d, d:2 * d].set(params['wk'])
    w_qkv = w_qkv.at[2 * d:, 2 * d:].set(params['wv'])
    b_qkv = jnp.concatenate([params['bq'], params['bk'], params['bv']]).reshape(1, 3 * d)
    w_gi = jnp.concatenate([params['wgate'], params['winfo']], axis=1)   # [2D, 2D]
    b_gi = jnp.concatenate([params['bgate'], params['binfo']]).reshape(1, 2 * d)
    return (w_qkv.astype(jnp.bfloat16), b_qkv.astype(jnp.float32),
            w_gi.astype(jnp.bfloat16), b_gi.astype(jnp.float32))


def ref_forward(query, key, value, params):
    """Pure-JAX f32 reference mirroring the PyTorch forward (eval, mask=None)."""
    b, n, d = query.shape
    dk = d // H

    def lin(x, w, bias):
        return x @ w + bias

    def split_heads(x):
        return x.reshape(b, n, H, dk).transpose(0, 2, 1, 3)           # [B,H,N,dk]

    q_ = split_heads(lin(query, params['wq'], params['bq']))
    k_ = split_heads(lin(key, params['wk'], params['bk']))
    v_ = split_heads(lin(value, params['wv'], params['bv']))

    scores = jnp.einsum('bhnd,bhmd->bhnm', q_, k_) / np.sqrt(float(dk))
    p = jax.nn.softmax(scores, axis=-1)
    x = jnp.einsum('bhnm,bhmd->bhnd', p, v_)
    x = x.transpose(0, 2, 1, 3).reshape(b, n, d)

    cat = jnp.concatenate([x, query], axis=-1)
    gate = cat @ params['wgate'] + params['bgate']
    info = cat @ params['winfo'] + params['binfo']
    return jax.nn.sigmoid(gate) * info


if __name__ == "__main__":
    root = jax.random.PRNGKey(0)
    k_in, k_par = jax.random.split(root)
    kq, kk, kv = jax.random.split(k_in, 3)

    query = jax.random.normal(kq, (B, N, D_MODEL), dtype=jnp.float32)
    key_t = jax.random.normal(kk, (B, N, D_MODEL), dtype=jnp.float32)
    value = jax.random.normal(kv, (B, N, D_MODEL), dtype=jnp.float32)

    params = make_params(k_par)
    packed = pack_params(params)

    out = multi_headed_dot_attention(query, key_t, value, packed)
    out = jax.block_until_ready(out)

    ref = jax.block_until_ready(ref_forward(query, key_t, value, params))

    assert out.shape == (B, N, D_MODEL), out.shape
    # bf16 MXU operands + approx reciprocal: compare with a slightly loose tolerance.
    np.testing.assert_allclose(np.asarray(out), np.asarray(ref), rtol=2e-2, atol=2e-2)

    print("KERNEL_OK")
</pallas_src>

<mosaic_0001>
module attributes {stable_mosaic.version = 11 : i64} {
  func.func @_mha_glu_kernel(%arg0: memref<16x96xf32, #tpu.memory_space<vmem>>, %arg1: memref<96x96xbf16, #tpu.memory_space<vmem>>, %arg2: memref<1x96xf32, #tpu.memory_space<vmem>>, %arg3: memref<64x64xbf16, #tpu.memory_space<vmem>>, %arg4: memref<1x64xf32, #tpu.memory_space<vmem>>, %arg5: memref<16x32xf32, #tpu.memory_space<vmem>>) attributes {dimension_semantics = [], scalar_prefetch = 0 : i64, scratch_operands = 0 : i64, tpu.core_type = #tpu.core_type<tc>} {
    %c0 = arith.constant 0 : index
    %c0_0 = arith.constant 0 : index
    %0 = vector.load %arg0[%c0, %c0_0] : memref<16x96xf32, #tpu.memory_space<vmem>>, vector<16x96xf32>
    %1 = arith.truncf %0 : vector<16x96xf32> to vector<16x96xbf16>
    %c0_1 = arith.constant 0 : index
    %c0_2 = arith.constant 0 : index
    %2 = vector.load %arg1[%c0_1, %c0_2] : memref<96x96xbf16, #tpu.memory_space<vmem>>, vector<96x96xbf16>
    %cst = arith.constant dense<0.000000e+00> : vector<16x96xf32>
    %3 = tpu.matmul %1, %2, %cst {dimension_numbers = #tpu.dot_dimension_numbers<[1], [0], [0], [1], [0, 0, 1, 1], [], []>} : vector<16x96xbf16>, vector<96x96xbf16>, vector<16x96xf32> -> vector<16x96xf32>
    %c0_3 = arith.constant 0 : index
    %c0_4 = arith.constant 0 : index
    %4 = vector.load %arg2[%c0_3, %c0_4] : memref<1x96xf32, #tpu.memory_space<vmem>>, vector<1x96xf32>
    %5 = vector.broadcast %4 : vector<1x96xf32> to vector<16x96xf32>
    %6 = arith.addf %3, %5 : vector<16x96xf32>
    %7 = arith.truncf %6 : vector<16x96xf32> to vector<16x96xbf16>
    %8 = vector.shape_cast %7 : vector<16x96xbf16> to vector<2x8x96xbf16>
    %9 = vector.extract_strided_slice %8 {offsets = [0, 0, 0], sizes = [2, 8, 8], strides = [1, 1, 1]} : vector<2x8x96xbf16> to vector<2x8x8xbf16>
    %10 = vector.extract_strided_slice %8 {offsets = [0, 0, 32], sizes = [2, 8, 8], strides = [1, 1, 1]} : vector<2x8x96xbf16> to vector<2x8x8xbf16>
    %11 = vector.extract_strided_slice %8 {offsets = [0, 0, 64], sizes = [2, 8, 8], strides = [1, 1, 1]} : vector<2x8x96xbf16> to vector<2x8x8xbf16>
    "tpu.trace_start"() <{level = 10 : i32, message = "bnd,bmd->bnm"}> : () -> ()
    %cst_5 = arith.constant dense<0.000000e+00> : vector<2x8x8xf32>
    %12 = tpu.matmul %9, %10, %cst_5 {dimension_numbers = #tpu.dot_dimension_numbers<[2], [2], [1], [1], [0, 0, 0, 1, 1, 1], [0], [0]>} : vector<2x8x8xbf16>, vector<2x8x8xbf16>, vector<2x8x8xf32> -> vector<2x8x8xf32>
    "tpu.trace_stop"() : () -> ()
    %cst_6 = arith.constant 0.353553385 : f32
    %13 = vector.broadcast %cst_6 : f32 to vector<2x8x8xf32>
    %14 = arith.mulf %12, %13 : vector<2x8x8xf32>
    %cst_7 = arith.constant dense<0xFF800000> : vector<2x8xf32>
    %15 = vector.multi_reduction <maximumf>, %14, %cst_7 [2] : vector<2x8x8xf32> to vector<2x8xf32>
    %16 = vector.shape_cast %15 : vector<2x8xf32> to vector<2x8x1xf32>
    %17 = vector.broadcast %16 : vector<2x8x1xf32> to vector<2x8x8xf32>
    %18 = arith.subf %14, %17 : vector<2x8x8xf32>
    %19 = math.exp %18 : vector<2x8x8xf32>
    %cst_8 = arith.constant dense<0.000000e+00> : vector<2x8xf32>
    %20 = vector.multi_reduction <add>, %19, %cst_8 [2] : vector<2x8x8xf32> to vector<2x8xf32>
    %21 = vector.shape_cast %20 : vector<2x8xf32> to vector<2x8x1xf32>
    %22 = tpu.reciprocal %21 {approx = true} : vector<2x8x1xf32> -> vector<2x8x1xf32>
    %23 = vector.broadcast %22 : vector<2x8x1xf32> to vector<2x8x8xf32>
    %24 = arith.mulf %19, %23 : vector<2x8x8xf32>
    %25 = arith.truncf %24 : vector<2x8x8xf32> to vector<2x8x8xbf16>
    "tpu.trace_start"() <{level = 10 : i32, message = "bnm,bmd->bnd"}> : () -> ()
    %cst_9 = arith.constant dense<0.000000e+00> : vector<2x8x8xf32>
    %26 = tpu.matmul %25, %11, %cst_9 {dimension_numbers = #tpu.dot_dimension_numbers<[2], [1], [1], [2], [0, 0, 0, 1, 1, 2], [0], [0]>} : vector<2x8x8xbf16>, vector<2x8x8xbf16>, vector<2x8x8xf32> -> vector<2x8x8xf32>
    "tpu.trace_stop"() : () -> ()
    %27 = vector.extract_strided_slice %8 {offsets = [0, 0, 8], sizes = [2, 8, 8], strides = [1, 1, 1]} : vector<2x8x96xbf16> to vector<2x8x8xbf16>
    %28 = vector.extract_strided_slice %8 {offsets = [0, 0, 40], sizes = [2, 8, 8], strides = [1, 1, 1]} : vector<2x8x96xbf16> to vector<2x8x8xbf16>
    %29 = vector.extract_strided_slice %8 {offsets = [0, 0, 72], sizes = [2, 8, 8], strides = [1, 1, 1]} : vector<2x8x96xbf16> to vector<2x8x8xbf16>
    "tpu.trace_start"() <{level = 10 : i32, message = "bnd,bmd->bnm"}> : () -> ()
    %cst_10 = arith.constant dense<0.000000e+00> : vector<2x8x8xf32>
    %30 = tpu.matmul %27, %28, %cst_10 {dimension_numbers = #tpu.dot_dimension_numbers<[2], [2], [1], [1], [0, 0, 0, 1, 1, 1], [0], [0]>} : vector<2x8x8xbf16>, vector<2x8x8xbf16>, vector<2x8x8xf32> -> vector<2x8x8xf32>
    "tpu.trace_stop"() : () -> ()
    %cst_11 = arith.constant 0.353553385 : f32
    %31 = vector.broadcast %cst_11 : f32 to vector<2x8x8xf32>
    %32 = arith.mulf %30, %31 : vector<2x8x8xf32>
    %cst_12 = arith.constant dense<0xFF800000> : vector<2x8xf32>
    %33 = vector.multi_reduction <maximumf>, %32, %cst_12 [2] : vector<2x8x8xf32> to vector<2x8xf32>
    %34 = vector.shape_cast %33 : vector<2x8xf32> to vector<2x8x1xf32>
    %35 = vector.broadcast %34 : vector<2x8x1xf32> to vector<2x8x8xf32>
    %36 = arith.subf %32, %35 : vector<2x8x8xf32>
    %37 = math.exp %36 : vector<2x8x8xf32>
    %cst_13 = arith.constant dense<0.000000e+00> : vector<2x8xf32>
    %38 = vector.multi_reduction <add>, %37, %cst_13 [2] : vector<2x8x8xf32> to vector<2x8xf32>
    %39 = vector.shape_cast %38 : vector<2x8xf32> to vector<2x8x1xf32>
    %40 = tpu.reciprocal %39 {approx = true} : vector<2x8x1xf32> -> vector<2x8x1xf32>
    %41 = vector.broadcast %40 : vector<2x8x1xf32> to vector<2x8x8xf32>
    %42 = arith.mulf %37, %41 : vector<2x8x8xf32>
    %43 = arith.truncf %42 : vector<2x8x8xf32> to vector<2x8x8xbf16>
    "tpu.trace_start"() <{level = 10 : i32, message = "bnm,bmd->bnd"}> : () -> ()
    %cst_14 = arith.constant dense<0.000000e+00> : vector<2x8x8xf32>
    %44 = tpu.matmul %43, %29, %cst_14 {dimension_numbers = #tpu.dot_dimension_numbers<[2], [1], [1], [2], [0, 0, 0, 1, 1, 2], [0], [0]>} : vector<2x8x8xbf16>, vector<2x8x8xbf16>, vector<2x8x8xf32> -> vector<2x8x8xf32>
    "tpu.trace_stop"() : () -> ()
    %45 = vector.extract_strided_slice %8 {offsets = [0, 0, 16], sizes = [2, 8, 8], strides = [1, 1, 1]} : vector<2x8x96xbf16> to vector<2x8x8xbf16>
    %46 = vector.extract_strided_slice %8 {offsets = [0, 0, 48], sizes = [2, 8, 8], strides = [1, 1, 1]} : vector<2x8x96xbf16> to vector<2x8x8xbf16>
    %47 = vector.extract_strided_slice %8 {offsets = [0, 0, 80], sizes = [2, 8, 8], strides = [1, 1, 1]} : vector<2x8x96xbf16> to vector<2x8x8xbf16>
    "tpu.trace_start"() <{level = 10 : i32, message = "bnd,bmd->bnm"}> : () -> ()
    %cst_15 = arith.constant dense<0.000000e+00> : vector<2x8x8xf32>
    %48 = tpu.matmul %45, %46, %cst_15 {dimension_numbers = #tpu.dot_dimension_numbers<[2], [2], [1], [1], [0, 0, 0, 1, 1, 1], [0], [0]>} : vector<2x8x8xbf16>, vector<2x8x8xbf16>, vector<2x8x8xf32> -> vector<2x8x8xf32>
    "tpu.trace_stop"() : () -> ()
    %cst_16 = arith.constant 0.353553385 : f32
    %49 = vector.broadcast %cst_16 : f32 to vector<2x8x8xf32>
    %50 = arith.mulf %48, %49 : vector<2x8x8xf32>
    %cst_17 = arith.constant dense<0xFF800000> : vector<2x8xf32>
    %51 = vector.multi_reduction <maximumf>, %50, %cst_17 [2] : vector<2x8x8xf32> to vector<2x8xf32>
    %52 = vector.shape_cast %51 : vector<2x8xf32> to vector<2x8x1xf32>
    %53 = vector.broadcast %52 : vector<2x8x1xf32> to vector<2x8x8xf32>
    %54 = arith.subf %50, %53 : vector<2x8x8xf32>
    %55 = math.exp %54 : vector<2x8x8xf32>
    %cst_18 = arith.constant dense<0.000000e+00> : vector<2x8xf32>
    %56 = vector.multi_reduction <add>, %55, %cst_18 [2] : vector<2x8x8xf32> to vector<2x8xf32>
    %57 = vector.shape_cast %56 : vector<2x8xf32> to vector<2x8x1xf32>
    %58 = tpu.reciprocal %57 {approx = true} : vector<2x8x1xf32> -> vector<2x8x1xf32>
    %59 = vector.broadcast %58 : vector<2x8x1xf32> to vector<2x8x8xf32>
    %60 = arith.mulf %55, %59 : vector<2x8x8xf32>
    %61 = arith.truncf %60 : vector<2x8x8xf32> to vector<2x8x8xbf16>
    "tpu.trace_start"() <{level = 10 : i32, message = "bnm,bmd->bnd"}> : () -> ()
    %cst_19 = arith.constant dense<0.000000e+00> : vector<2x8x8xf32>
    %62 = tpu.matmul %61, %47, %cst_19 {dimension_numbers = #tpu.dot_dimension_numbers<[2], [1], [1], [2], [0, 0, 0, 1, 1, 2], [0], [0]>} : vector<2x8x8xbf16>, vector<2x8x8xbf16>, vector<2x8x8xf32> -> vector<2x8x8xf32>
    "tpu.trace_stop"() : () -> ()
    %63 = vector.extract_strided_slice %8 {offsets = [0, 0, 24], sizes = [2, 8, 8], strides = [1, 1, 1]} : vector<2x8x96xbf16> to vector<2x8x8xbf16>
    %64 = vector.extract_strided_slice %8 {offsets = [0, 0, 56], sizes = [2, 8, 8], strides = [1, 1, 1]} : vector<2x8x96xbf16> to vector<2x8x8xbf16>
    %65 = vector.extract_strided_slice %8 {offsets = [0, 0, 88], sizes = [2, 8, 8], strides = [1, 1, 1]} : vector<2x8x96xbf16> to vector<2x8x8xbf16>
    "tpu.trace_start"() <{level = 10 : i32, message = "bnd,bmd->bnm"}> : () -> ()
    %cst_20 = arith.constant dense<0.000000e+00> : vector<2x8x8xf32>
    %66 = tpu.matmul %63, %64, %cst_20 {dimension_numbers = #tpu.dot_dimension_numbers<[2], [2], [1], [1], [0, 0, 0, 1, 1, 1], [0], [0]>} : vector<2x8x8xbf16>, vector<2x8x8xbf16>, vector<2x8x8xf32> -> vector<2x8x8xf32>
    "tpu.trace_stop"() : () -> ()
    %cst_21 = arith.constant 0.353553385 : f32
    %67 = vector.broadcast %cst_21 : f32 to vector<2x8x8xf32>
    %68 = arith.mulf %66, %67 : vector<2x8x8xf32>
    %cst_22 = arith.constant dense<0xFF800000> : vector<2x8xf32>
    %69 = vector.multi_reduction <maximumf>, %68, %cst_22 [2] : vector<2x8x8xf32> to vector<2x8xf32>
    %70 = vector.shape_cast %69 : vector<2x8xf32> to vector<2x8x1xf32>
    %71 = vector.broadcast %70 : vector<2x8x1xf32> to vector<2x8x8xf32>
    %72 = arith.subf %68, %71 : vector<2x8x8xf32>
    %73 = math.exp %72 : vector<2x8x8xf32>
    %cst_23 = arith.constant dense<0.000000e+00> : vector<2x8xf32>
    %74 = vector.multi_reduction <add>, %73, %cst_23 [2] : vector<2x8x8xf32> to vector<2x8xf32>
    %75 = vector.shape_cast %74 : vector<2x8xf32> to vector<2x8x1xf32>
    %76 = tpu.reciprocal %75 {approx = true} : vector<2x8x1xf32> -> vector<2x8x1xf32>
    %77 = vector.broadcast %76 : vector<2x8x1xf32> to vector<2x8x8xf32>
    %78 = arith.mulf %73, %77 : vector<2x8x8xf32>
    %79 = arith.truncf %78 : vector<2x8x8xf32> to vector<2x8x8xbf16>
    "tpu.trace_start"() <{level = 10 : i32, message = "bnm,bmd->bnd"}> : () -> ()
    %cst_24 = arith.constant dense<0.000000e+00> : vector<2x8x8xf32>
    %80 = tpu.matmul %79, %65, %cst_24 {dimension_numbers = #tpu.dot_dimension_numbers<[2], [1], [1], [2], [0, 0, 0, 1, 1, 2], [0], [0]>} : vector<2x8x8xbf16>, vector<2x8x8xbf16>, vector<2x8x8xf32> -> vector<2x8x8xf32>
    "tpu.trace_stop"() : () -> ()
    %81 = tpu.concatenate %26, %44, %62, %80 in 2 : vector<2x8x8xf32>, vector<2x8x8xf32>, vector<2x8x8xf32>, vector<2x8x8xf32> -> vector<2x8x32xf32>
    %82 = vector.shape_cast %81 : vector<2x8x32xf32> to vector<16x32xf32>
    %83 = vector.extract_strided_slice %0 {offsets = [0, 0], sizes = [16, 32], strides = [1, 1]} : vector<16x96xf32> to vector<16x32xf32>
    %84 = tpu.concatenate %82, %83 in 1 : vector<16x32xf32>, vector<16x32xf32> -> vector<16x64xf32>
    %85 = arith.truncf %84 : vector<16x64xf32> to vector<16x64xbf16>
    %c0_25 = arith.constant 0 : index
    %c0_26 = arith.constant 0 : index
    %86 = vector.load %arg3[%c0_25, %c0_26] : memref<64x64xbf16, #tpu.memory_space<vmem>>, vector<64x64xbf16>
    %cst_27 = arith.constant dense<0.000000e+00> : vector<16x64xf32>
    %87 = tpu.matmul %85, %86, %cst_27 {dimension_numbers = #tpu.dot_dimension_numbers<[1], [0], [0], [1], [0, 0, 1, 1], [], []>} : vector<16x64xbf16>, vector<64x64xbf16>, vector<16x64xf32> -> vector<16x64xf32>
    %c0_28 = arith.constant 0 : index
    %c0_29 = arith.constant 0 : index
    %88 = vector.load %arg4[%c0_28, %c0_29] : memref<1x64xf32, #tpu.memory_space<vmem>>, vector<1x64xf32>
    %89 = vector.broadcast %88 : vector<1x64xf32> to vector<16x64xf32>
    %90 = arith.addf %87, %89 : vector<16x64xf32>
    %91 = vector.extract_strided_slice %90 {offsets = [0, 0], sizes = [16, 32], strides = [1, 1]} : vector<16x64xf32> to vector<16x32xf32>
    %92 = vector.extract_strided_slice %90 {offsets = [0, 32], sizes = [16, 32], strides = [1, 1]} : vector<16x64xf32> to vector<16x32xf32>
    %93 = arith.negf %91 : vector<16x32xf32>
    %94 = math.exp %93 : vector<16x32xf32>
    %cst_30 = arith.constant 1.000000e+00 : f32
    %95 = vector.broadcast %cst_30 : f32 to vector<16x32xf32>
    %96 = arith.addf %95, %94 : vector<16x32xf32>
    %97 = arith.divf %95, %96 : vector<16x32xf32>
    %98 = arith.mulf %97, %92 : vector<16x32xf32>
    %c0_31 = arith.constant 0 : index
    %c0_32 = arith.constant 0 : index
    %99 = vector.load %arg5[%c0_31, %c0_32] : memref<16x32xf32, #tpu.memory_space<vmem>>, vector<16x32xf32>
    tpu.vector_store %arg5[%c0_31, %c0_32], %98 {strides = array<i32>} : memref<16x32xf32, #tpu.memory_space<vmem>>, vector<16x32xf32>,
    return
  }
}

</mosaic_0001>

<llo_original>
// kernel: tpu_custom_call.1
$region0: #{tpu_custom_call.1}
  #allocation0 [shape = 'u32[]', space=smem, size = 0x4, offset = 0x4, fixed_abs, tag = 'smem constant byte address 0x4 - core index']
  #allocation1 [shape = 'u32[144,128]{1,0:T(1,128)}', space=vmem, size = 0x12000, scoped, tag = 'internal scratch']
  %s0 = inlined_call_operand.hbm [shape: f32[16,96], index: 0, kind: input, shape index: {}]
  %s1 = inlined_call_operand.hbm [shape: bf16[96,96], index: 1, kind: input, shape index: {}]
  %s2 = inlined_call_operand.vmem [shape: f32[1,96], index: 2, kind: input, shape index: {}]
  %s3 = inlined_call_operand.hbm [shape: bf16[64,64], index: 3, kind: input, shape index: {}]
  %s4 = inlined_call_operand.vmem [shape: f32[1,64], index: 4, kind: input, shape index: {}]
  %s5 = inlined_call_operand.hbm [shape: f32[16,32], index: 5, kind: output, shape index: {}]
  %s6 = sld [smem:[#allocation0]]
  $region42: #{tpu_custom_call.1} parent=0
    _
  %s8 = ssub.s32 1, %s6
  %s9 = scalar_select 0, %s8, %s6
  $region1: #{tpu_custom_call.1} parent=0
    #allocation2 [shape = 'u8[8192]{0}', space=vmem, size = 0x2000, scoped, tag = 'input window, operand 0, single buffered']
    #allocation3 [shape = 's32[1]{0}', space=sflag, size = 0x4, scoped, tag = 'scoped memory for tpu_custom_call.1']
    #allocation4 [shape = 's32[1]{0}', space=sflag, size = 0x4, scoped, tag = 'scoped memory for tpu_custom_call.1']
    #allocation5 [shape = 'u8[24576]{0}', space=vmem, size = 0x6000, scoped, tag = 'input window, operand 1, single buffered']
    #allocation6 [shape = 's32[1]{0}', space=sflag, size = 0x4, scoped, tag = 'scoped memory for tpu_custom_call.1']
    #allocation7 [shape = 'u8[16384]{0}', space=vmem, size = 0x4000, scoped, tag = 'input window, operand 3, single buffered']
    #allocation8 [shape = 'u8[8192]{0}', space=vmem, size = 0x2000, scoped, tag = 'output window, operand 0, single buffered']
    %10 = vsyncpa [#allocation3], 0
    %11 = vsyncpa [#allocation6], 0
    %12 = vsyncpa [#allocation4], 0
    // Predicated region
    $region2: #{tpu_custom_call.1} parent=1 // pred_check
      _
    $region3: #{tpu_custom_call.1} parent=1 // pred_check_branch
      %14 = sbr.rel (0) target = $region5
    $region4: #{tpu_custom_call.1} parent=1 // pred_region
      %s16 = ssub.s32 256, 256
      %17 = vsyncadd [#allocation3], %s16
      %s18 = sshll.u32 [#allocation2], 4
      %s19 = int_to_ptr.vmem [resolvable:$true] %s18
      %24 = dma.hbm_to_vmem [thread:$0]  %s0, 256, %s19, [#allocation3], 128, 128, 8
    $region5: #{tpu_custom_call.1} parent=1 // pred_fallthru
      _
    // Predicated region
    $region6: #{tpu_custom_call.1} parent=1 // pred_check
      _
    $region7: #{tpu_custom_call.1} parent=1 // pred_check_branch
      %26 = sbr.rel (0) target = $region9
    $region8: #{tpu_custom_call.1} parent=1 // pred_region
      %s28 = ssub.s32 768, 768
      %29 = vsyncadd [#allocation6], %s28
      %s30 = sshll.u32 [#allocation5], 4
      %s31 = int_to_ptr.vmem [resolvable:$true] %s30
      %36 = dma.hbm_to_vmem [thread:$0]  %s1, 768, %s31, [#allocation6], 64, 64, 4
    $region9: #{tpu_custom_call.1} parent=1 // pred_fallthru
      _
    // Predicated region
    $region10: #{tpu_custom_call.1} parent=1 // pred_check
      _
    $region11: #{tpu_custom_call.1} parent=1 // pred_check_branch
      %38 = sbr.rel (0) target = $region13
    $region12: #{tpu_custom_call.1} parent=1 // pred_region
      _
    $region13: #{tpu_custom_call.1} parent=1 // pred_fallthru
      _
    // Predicated region
    $region14: #{tpu_custom_call.1} parent=1 // pred_check
      _
    $region15: #{tpu_custom_call.1} parent=1 // pred_check_branch
      %40 = sbr.rel (0) target = $region17
    $region16: #{tpu_custom_call.1} parent=1 // pred_region
      %s42 = ssub.s32 512, 512
      %43 = vsyncadd [#allocation6], %s42
      %s44 = sshll.u32 [#allocation7], 4
      %s45 = int_to_ptr.vmem [resolvable:$true] %s44
      %50 = dma.hbm_to_vmem [thread:$0]  %s3, 512, %s45, [#allocation6], 64, 64, 4
    $region17: #{tpu_custom_call.1} parent=1 // pred_fallthru
      _
    // Predicated region
    $region18: #{tpu_custom_call.1} parent=1 // pred_check
      _
    $region19: #{tpu_custom_call.1} parent=1 // pred_check_branch
      %52 = sbr.rel (0) target = $region21
    $region20: #{tpu_custom_call.1} parent=1 // pred_region
      _
    $region21: #{tpu_custom_call.1} parent=1 // pred_fallthru
      _
    // Predicated region
    $region22: #{tpu_custom_call.1} parent=1 // pred_check
      _
    $region23: #{tpu_custom_call.1} parent=1 // pred_check_branch
      %54 = sbr.rel (0) target = $region25
    $region24: #{tpu_custom_call.1} parent=1 // pred_region
      %55 = dma.done [#allocation3], 256
    $region25: #{tpu_custom_call.1} parent=1 // pred_fallthru
      _
    // Predicated region
    $region26: #{tpu_custom_call.1} parent=1 // pred_check
      _
    $region27: #{tpu_custom_call.1} parent=1 // pred_check_branch
      %57 = sbr.rel (0) target = $region29
    $region28: #{tpu_custom_call.1} parent=1 // pred_region
      %58 = dma.done [#allocation6], 768
    $region29: #{tpu_custom_call.1} parent=1 // pred_fallthru
      _
    // Predicated region
    $region30: #{tpu_custom_call.1} parent=1 // pred_check
      _
    $region31: #{tpu_custom_call.1} parent=1 // pred_check_branch
      %60 = sbr.rel (0) target = $region33
    $region32: #{tpu_custom_call.1} parent=1 // pred_region
      %61 = dma.done [#allocation6], 512
    $region33: #{tpu_custom_call.1} parent=1 // pred_fallthru
      _
    %v63 = vld [vmem:[#allocation2] sm:$0xff]
    %v64 = vld [vmem:[#allocation2 + $0x8] sm:$0xff]
    %v65 = vpack.c.bf16 %v64, %v63
    %v66 = vld [vmem:[#allocation5] sm:$0xf]
    %v67 = vld [vmem:[#allocation5 + $0x4] sm:$0xf]
    %v68 = vld [vmem:[#allocation5 + $0x8] sm:$0xf]
    %v69 = vld [vmem:[#allocation5 + $0xc] sm:$0xf]
    %v70 = vld [vmem:[#allocation5 + $0x10] sm:$0xf]
    %v71 = vld [vmem:[#allocation5 + $0x14] sm:$0xf]
    %v72 = vld [vmem:[#allocation5 + $0x18] sm:$0xf]
    %v73 = vld [vmem:[#allocation5 + $0x1c] sm:$0xf]
    %v74 = vld [vmem:[#allocation5 + $0x20] sm:$0xf]
    %v75 = vld [vmem:[#allocation5 + $0x24] sm:$0xf]
    %v76 = vld [vmem:[#allocation5 + $0x28] sm:$0xf]
    %v77 = vld [vmem:[#allocation5 + $0x2c] sm:$0xf]
    %v78 = vld [vmem:[%s2] sm:$0x1]
    %v80 = vlaneseq
    %v81 = vshrl.u32 %v80, 7
    %v82 = vsub.s32 0, %v81
    %v83 = vrot.slane %v78, %v82
    %v97 = vunpack.c.l.b16 %v66
    %v98 = vunpack.c.l.b16 %v67
    %v99 = vunpack.c.l.b16 %v68
    %v100 = vunpack.c.l.b16 %v69
    %v101 = vunpack.c.l.b16 %v70
    %v102 = vunpack.c.l.b16 %v71
    %v103 = vunpack.c.l.b16 %v72
    %v104 = vunpack.c.l.b16 %v73
    %v105 = vunpack.c.l.b16 %v74
    %v106 = vunpack.c.l.b16 %v75
    %v107 = vunpack.c.l.b16 %v76
    %v108 = vunpack.c.l.b16 %v77
    %v109 = vpack.c.b16 %v98, %v97
    %v110 = vpack.c.b16 %v100, %v99
    %v111 = vpack.c.b16 %v102, %v101
    %v112 = vpack.c.b16 %v104, %v103
    %v113 = vpack.c.b16 %v106, %v105
    %v114 = vpack.c.b16 %v108, %v107
    %vm121 = vcmask 785408
    %v123 = vsel %vm121, %v65, 0
    %125 = vmatprep.subr.bf16.mxu0 0
    %126 = vmatpush1.bf16.msra.mxu0 %v109
    %127 = vmatprep.subr.bf16.mxu0 0
    %128 = vmatpush1.bf16.msra.mxu0 %v110
    %129 = vmatprep.subr.bf16.mxu0 0
    %130 = vmatpush1.bf16.msra.mxu0 %v111
    %131 = vmatprep.subr.bf16.mxu0 0
    %132 = vmatpush1.bf16.msra.mxu0 %v112
    %133 = vmatprep.subr.bf16.mxu0 0
    %134 = vmatpush1.bf16.msra.mxu0 %v113
    %135 = vmatprep.subr.bf16.mxu0 0
    %136 = vmatpush1.bf16.msra.mxu0 %v114
    %137 = vmatprep.subr.bf16.mxu0 0
    %138 = vmatpush1.bf16.msra.mxu0 0
    %139 = vmatprep.subr.bf16.mxu0 0
    %140 = vmatpush1.bf16.msra.mxu0 0
    %141 = vmatprep.subr.bf16.mxu0 0
    %142 = vmatpush1.bf16.msra.mxu0 0
    %143 = vmatprep.subr.bf16.mxu0 0
    %144 = vmatpush1.bf16.msra.mxu0 0
    %145 = vmatprep.subr.bf16.mxu0 0
    %146 = vmatpush1.bf16.msra.mxu0 0
    %147 = vmatprep.subr.bf16.mxu0 0
    %148 = vmatpush1.bf16.msra.mxu0 0
    %149 = vmatprep.subr.bf16.mxu0 0
    %150 = vmatpush1.bf16.msra.mxu0 0
    %151 = vmatprep.subr.bf16.mxu0 0
    %152 = vmatpush1.bf16.msra.mxu0 0
    %153 = vmatprep.subr.bf16.mxu0 0
    %154 = vmatpush1.bf16.msra.mxu0 0
    %155 = vmatprep.subr.bf16.mxu0 0
    %156 = vmatpush1.bf16.msra.mxu0 0
    %157 = vmatprep.mubr.bf16.mxu0 0
    %158 = vmatmul.mubr.bf16.gmra.mrb[0].mxu0 %v123
    %v159 = vpop.f32.mrb[0].mxu0
    %v160 = vadd.f32 %v83, %v159
    %v161 = vpop.f32.mrb[0].mxu0
    %v162 = vpop.f32.mrb[0].mxu0
    %v163 = vadd.f32 %v83, %v162
    %v164 = vpop.f32.mrb[0].mxu0
    %165 = vdwg.mxu0
    %v166 = vpack.c.bf16 %v163, %v160
    %v168 = vunpack.c.l.b16 %v166
    %v169 = vunpack.c.h.b16 %v166
    %v170 = vpack.c.b16 %v168, %v168
    %v171 = vpack.c.b16 %v169, %v169
    %172 = vrot.lane.b32.xlu0 %v170, 96
    %v173 = vpop.permute.xlu0 %172
    %vm174 = vcmask 64512
    %v176 = vsel %vm174, %v170, 0
    %v179 = vsel %vm174, %v173, 0
    %181 = vmatprep.subr.bf16.mxu0 0
    %182 = vmatpush1.bf16.xpose.msra.mxu0 %v179
    %183 = vmatprep.subr.bf16.mxu0 0
    %184 = vmatpush1.bf16.xpose.msra.mxu0 0
    %185 = vmatprep.subr.bf16.mxu0 0
    %186 = vmatpush1.bf16.xpose.msra.mxu0 0
    %187 = vmatprep.subr.bf16.mxu0 0
    %188 = vmatpush1.bf16.xpose.msra.mxu0 0
    %189 = vmatprep.subr.bf16.mxu0 0
    %190 = vmatpush1.bf16.xpose.msra.mxu0 0
    %191 = vmatprep.subr.bf16.mxu0 0
    %192 = vmatpush1.bf16.xpose.msra.mxu0 0
    %193 = vmatprep.subr.bf16.mxu0 0
    %194 = vmatpush1.bf16.xpose.msra.mxu0 0
    %195 = vmatprep.subr.bf16.mxu0 0
    %196 = vmatpush1.bf16.xpose.msra.mxu0 0
    %197 = vmatprep.subr.bf16.mxu0 0
    %198 = vmatpush1.bf16.xpose.msra.mxu0 0
    %199 = vmatprep.subr.bf16.mxu0 0
    %200 = vmatpush1.bf16.xpose.msra.mxu0 0
    %201 = vmatprep.subr.bf16.mxu0 0
    %202 = vmatpush1.bf16.xpose.msra.mxu0 0
    %203 = vmatprep.subr.bf16.mxu0 0
    %204 = vmatpush1.bf16.xpose.msra.mxu0 0
    %205 = vmatprep.subr.bf16.mxu0 0
    %206 = vmatpush1.bf16.xpose.msra.mxu0 0
    %207 = vmatprep.subr.bf16.mxu0 0
    %208 = vmatpush1.bf16.xpose.msra.mxu0 0
    %209 = vmatprep.subr.bf16.mxu0 0
    %210 = vmatpush1.bf16.xpose.msra.mxu0 0
    %211 = vmatprep.subr.bf16.mxu0 0
    %212 = vmatpush1.bf16.xpose.msra.mxu0 0
    %213 = vmatprep.mubr.bf16.mxu0 0
    %214 = vmatmul.mubr.bf16.gmra.mrb[0].mxu0 %v176
    %v215 = vpop.f32.mrb[0].mxu0
    %v216 = vadd.f32 0.0, %v215
    %v217 = vpop.f32.mrb[0].mxu0
    %v218 = vpop.f32.mrb[0].mxu0
    %v219 = vpop.f32.mrb[0].mxu0
    %220 = vdwg.mxu0
    %221 = vrot.lane.b32.xlu0 %v171, 96
    %v222 = vpop.permute.xlu0 %221
    %v224 = vsel %vm174, %v171, 0
    %v227 = vsel %vm174, %v222, 0
    %229 = vmatprep.subr.bf16.mxu0 0
    %230 = vmatpush1.bf16.xpose.msra.mxu0 %v227
    %231 = vmatprep.subr.bf16.mxu0 0
    %232 = vmatpush1.bf16.xpose.msra.mxu0 0
    %233 = vmatprep.subr.bf16.mxu0 0
    %234 = vmatpush1.bf16.xpose.msra.mxu0 0
    %235 = vmatprep.subr.bf16.mxu0 0
    %236 = vmatpush1.bf16.xpose.msra.mxu0 0
    %237 = vmatprep.subr.bf16.mxu0 0
    %238 = vmatpush1.bf16.xpose.msra.mxu0 0
    %239 = vmatprep.subr.bf16.mxu0 0
    %240 = vmatpush1.bf16.xpose.msra.mxu0 0
    %241 = vmatprep.subr.bf16.mxu0 0
    %242 = vmatpush1.bf16.xpose.msra.mxu0 0
    %243 = vmatprep.subr.bf16.mxu0 0
    %244 = vmatpush1.bf16.xpose.msra.mxu0 0
    %245 = vmatprep.subr.bf16.mxu0 0
    %246 = vmatpush1.bf16.xpose.msra.mxu0 0
    %247 = vmatprep.subr.bf16.mxu0 0
    %248 = vmatpush1.bf16.xpose.msra.mxu0 0
    %249 = vmatprep.subr.bf16.mxu0 0
    %250 = vmatpush1.bf16.xpose.msra.mxu0 0
    %251 = vmatprep.subr.bf16.mxu0 0
    %252 = vmatpush1.bf16.xpose.msra.mxu0 0
    %253 = vmatprep.subr.bf16.mxu0 0
    %254 = vmatpush1.bf16.xpose.msra.mxu0 0
    %255 = vmatprep.subr.bf16.mxu0 0
    %256 = vmatpush1.bf16.xpose.msra.mxu0 0
    %257 = vmatprep.subr.bf16.mxu0 0
    %258 = vmatpush1.bf16.xpose.msra.mxu0 0
    %259 = vmatprep.subr.bf16.mxu0 0
    %260 = vmatpush1.bf16.xpose.msra.mxu0 0
    %261 = vmatprep.mubr.bf16.mxu0 0
    %262 = vmatmul.mubr.bf16.gmra.mrb[0].mxu0 %v224
    %v263 = vpop.f32.mrb[0].mxu0
    %v264 = vadd.f32 0.0, %v263
    %v265 = vpop.f32.mrb[0].mxu0
    %v266 = vpop.f32.mrb[0].mxu0
    %v267 = vpop.f32.mrb[0].mxu0
    %268 = vdwg.mxu0
    %v269 = vmul.f32 %v216, 0.35355338
    %v270 = vmul.f32 %v264, 0.35355338
    %v271 = vsel %vm174, %v269, -inf
    %272 = vmax.xlane.f32.xlu0 %v271
    %v273 = vpop.xlane.xlu0 %272
    %v274 = vsel %vm174, %v270, -inf
    %275 = vmax.xlane.f32.xlu0 %v274
    %v276 = vpop.xlane.xlu0 %275
    %v277 = vsub.f32 %v269, %v273
    %v278 = vsub.f32 %v270, %v276
    %v279 = vmul.f32 %v277, 1.442695
    %v280 = vpow.pop %v279
    %v281 = vmul.f32 %v278, 1.442695
    %v282 = vpow.pop %v281
    %v283 = vsel %vm174, %v280, 0.0
    %284 = vadd.xlane.f32.xlu0 %v283
    %v285 = vpop.xlane.xlu0 %284
    %v286 = vsel %vm174, %v282, 0.0
    %287 = vadd.xlane.f32.xlu0 %v286
    %v288 = vpop.xlane.xlu0 %287
    %v289 = vrcp.pop %v285
    %v290 = vrcp.pop %v288
    %v291 = vmul.f32 %v280, %v289
    %v292 = vmul.f32 %v282, %v290
    %v293 = vpack.c.bf16 %v291, %v291
    %v294 = vpack.c.bf16 %v292, %v292
    %295 = vrot.lane.b32.xlu0 %v170, 64
    %v296 = vpop.permute.xlu0 %295
    %v298 = vsel %vm174, %v293, 0
    %vm300 = vcmask 1043456
    %v302 = vsel %vm300, %v296, 0
    %304 = vmatprep.subr.bf16.mxu0 0
    %305 = vmatpush1.bf16.msra.mxu0 %v302
    %306 = vmatprep.subr.bf16.mxu0 0
    %307 = vmatpush1.bf16.msra.mxu0 0
    %308 = vmatprep.subr.bf16.mxu0 0
    %309 = vmatpush1.bf16.msra.mxu0 0
    %310 = vmatprep.subr.bf16.mxu0 0
    %311 = vmatpush1.bf16.msra.mxu0 0
    %312 = vmatprep.subr.bf16.mxu0 0
    %313 = vmatpush1.bf16.msra.mxu0 0
    %314 = vmatprep.subr.bf16.mxu0 0
    %315 = vmatpush1.bf16.msra.mxu0 0
    %316 = vmatprep.subr.bf16.mxu0 0
    %317 = vmatpush1.bf16.msra.mxu0 0
    %318 = vmatprep.subr.bf16.mxu0 0
    %319 = vmatpush1.bf16.msra.mxu0 0
    %320 = vmatprep.subr.bf16.mxu0 0
    %321 = vmatpush1.bf16.msra.mxu0 0
    %322 = vmatprep.subr.bf16.mxu0 0
    %323 = vmatpush1.bf16.msra.mxu0 0
    %324 = vmatprep.subr.bf16.mxu0 0
    %325 = vmatpush1.bf16.msra.mxu0 0
    %326 = vmatprep.subr.bf16.mxu0 0
    %327 = vmatpush1.bf16.msra.mxu0 0
    %328 = vmatprep.subr.bf16.mxu0 0
    %329 = vmatpush1.bf16.msra.mxu0 0
    %330 = vmatprep.subr.bf16.mxu0 0
    %331 = vmatpush1.bf16.msra.mxu0 0
    %332 = vmatprep.subr.bf16.mxu0 0
    %333 = vmatpush1.bf16.msra.mxu0 0
    %334 = vmatprep.subr.bf16.mxu0 0
    %335 = vmatpush1.bf16.msra.mxu0 0
    %336 = vmatprep.mubr.bf16.mxu0 0
    %337 = vmatmul.mubr.bf16.gmra.mrb[0].mxu0 %v298
    %v338 = vpop.f32.mrb[0].mxu0
    %v339 = vadd.f32 0.0, %v338
    %v340 = vpop.f32.mrb[0].mxu0
    %v341 = vpop.f32.mrb[0].mxu0
    %v342 = vpop.f32.mrb[0].mxu0
    %343 = vdwg.mxu0
    %344 = vrot.lane.b32.xlu0 %v171, 64
    %v345 = vpop.permute.xlu0 %344
    %v347 = vsel %vm174, %v294, 0
    %v350 = vsel %vm300, %v345, 0
    %352 = vmatprep.subr.bf16.mxu0 0
    %353 = vmatpush1.bf16.msra.mxu0 %v350
    %354 = vmatprep.subr.bf16.mxu0 0
    %355 = vmatpush1.bf16.msra.mxu0 0
    %356 = vmatprep.subr.bf16.mxu0 0
    %357 = vmatpush1.bf16.msra.mxu0 0
    %358 = vmatprep.subr.bf16.mxu0 0
    %359 = vmatpush1.bf16.msra.mxu0 0
    %360 = vmatprep.subr.bf16.mxu0 0
    %361 = vmatpush1.bf16.msra.mxu0 0
    %362 = vmatprep.subr.bf16.mxu0 0
    %363 = vmatpush1.bf16.msra.mxu0 0
    %364 = vmatprep.subr.bf16.mxu0 0
    %365 = vmatpush1.bf16.msra.mxu0 0
    %366 = vmatprep.subr.bf16.mxu0 0
    %367 = vmatpush1.bf16.msra.mxu0 0
    %368 = vmatprep.subr.bf16.mxu0 0
    %369 = vmatpush1.bf16.msra.mxu0 0
    %370 = vmatprep.subr.bf16.mxu0 0
    %371 = vmatpush1.bf16.msra.mxu0 0
    %372 = vmatprep.subr.bf16.mxu0 0
    %373 = vmatpush1.bf16.msra.mxu0 0
    %374 = vmatprep.subr.bf16.mxu0 0
    %375 = vmatpush1.bf16.msra.mxu0 0
    %376 = vmatprep.subr.bf16.mxu0 0
    %377 = vmatpush1.bf16.msra.mxu0 0
    %378 = vmatprep.subr.bf16.mxu0 0
    %379 = vmatpush1.bf16.msra.mxu0 0
    %380 = vmatprep.subr.bf16.mxu0 0
    %381 = vmatpush1.bf16.msra.mxu0 0
    %382 = vmatprep.subr.bf16.mxu0 0
    %383 = vmatpush1.bf16.msra.mxu0 0
    %384 = vmatprep.mubr.bf16.mxu0 0
    %385 = vmatmul.mubr.bf16.gmra.mrb[0].mxu0 %v347
    %v386 = vpop.f32.mrb[0].mxu0
    %v387 = vadd.f32 0.0, %v386
    %v388 = vpop.f32.mrb[0].mxu0
    %v389 = vpop.f32.mrb[0].mxu0
    %v390 = vpop.f32.mrb[0].mxu0
    %391 = vdwg.mxu0
    %392 = vrot.lane.b32.xlu0 %v170, 120
    %v393 = vpop.permute.xlu0 %392
    %394 = vrot.lane.b32.xlu0 %v170, 88
    %v395 = vpop.permute.xlu0 %394
    %v397 = vsel %vm174, %v393, 0
    %v400 = vsel %vm174, %v395, 0
    %402 = vmatprep.subr.bf16.mxu0 0
    %403 = vmatpush1.bf16.xpose.msra.mxu0 %v400
    %404 = vmatprep.subr.bf16.mxu0 0
    %405 = vmatpush1.bf16.xpose.msra.mxu0 0
    %406 = vmatprep.subr.bf16.mxu0 0
    %407 = vmatpush1.bf16.xpose.msra.mxu0 0
    %408 = vmatprep.subr.bf16.mxu0 0
    %409 = vmatpush1.bf16.xpose.msra.mxu0 0
    %410 = vmatprep.subr.bf16.mxu0 0
    %411 = vmatpush1.bf16.xpose.msra.mxu0 0
    %412 = vmatprep.subr.bf16.mxu0 0
    %413 = vmatpush1.bf16.xpose.msra.mxu0 0
    %414 = vmatprep.subr.bf16.mxu0 0
    %415 = vmatpush1.bf16.xpose.msra.mxu0 0
    %416 = vmatprep.subr.bf16.mxu0 0
    %417 = vmatpush1.bf16.xpose.msra.mxu0 0
    %418 = vmatprep.subr.bf16.mxu0 0
    %419 = vmatpush1.bf16.xpose.msra.mxu0 0
    %420 = vmatprep.subr.bf16.mxu0 0
    %421 = vmatpush1.bf16.xpose.msra.mxu0 0
    %422 = vmatprep.subr.bf16.mxu0 0
    %423 = vmatpush1.bf16.xpose.msra.mxu0 0
    %424 = vmatprep.subr.bf16.mxu0 0
    %425 = vmatpush1.bf16.xpose.msra.mxu0 0
    %426 = vmatprep.subr.bf16.mxu0 0
    %427 = vmatpush1.bf16.xpose.msra.mxu0 0
    %428 = vmatprep.subr.bf16.mxu0 0
    %429 = vmatpush1.bf16.xpose.msra.mxu0 0
    %430 = vmatprep.subr.bf16.mxu0 0
    %431 = vmatpush1.bf16.xpose.msra.mxu0 0
    %432 = vmatprep.subr.bf16.mxu0 0
    %433 = vmatpush1.bf16.xpose.msra.mxu0 0
    %434 = vmatprep.mubr.bf16.mxu0 0
    %435 = vmatmul.mubr.bf16.gmra.mrb[0].mxu0 %v397
    %v436 = vpop.f32.mrb[0].mxu0
    %v437 = vadd.f32 0.0, %v436
    %v438 = vpop.f32.mrb[0].mxu0
    %v439 = vpop.f32.mrb[0].mxu0
    %v440 = vpop.f32.mrb[0].mxu0
    %441 = vdwg.mxu0
    %442 = vrot.lane.b32.xlu0 %v171, 120
    %v443 = vpop.permute.xlu0 %442
    %444 = vrot.lane.b32.xlu0 %v171, 88
    %v445 = vpop.permute.xlu0 %444
    %v447 = vsel %vm174, %v443, 0
    %v450 = vsel %vm174, %v445, 0
    %452 = vmatprep.subr.bf16.mxu0 0
    %453 = vmatpush1.bf16.xpose.msra.mxu0 %v450
    %454 = vmatprep.subr.bf16.mxu0 0
    %455 = vmatpush1.bf16.xpose.msra.mxu0 0
    %456 = vmatprep.subr.bf16.mxu0 0
    %457 = vmatpush1.bf16.xpose.msra.mxu0 0
    %458 = vmatprep.subr.bf16.mxu0 0
    %459 = vmatpush1.bf16.xpose.msra.mxu0 0
    %460 = vmatprep.subr.bf16.mxu0 0
    %461 = vmatpush1.bf16.xpose.msra.mxu0 0
    %462 = vmatprep.subr.bf16.mxu0 0
    %463 = vmatpush1.bf16.xpose.msra.mxu0 0
    %464 = vmatprep.subr.bf16.mxu0 0
    %465 = vmatpush1.bf16.xpose.msra.mxu0 0
    %466 = vmatprep.subr.bf16.mxu0 0
    %467 = vmatpush1.bf16.xpose.msra.mxu0 0
    %468 = vmatprep.subr.bf16.mxu0 0
    %469 = vmatpush1.bf16.xpose.msra.mxu0 0
    %470 = vmatprep.subr.bf16.mxu0 0
    %471 = vmatpush1.bf16.xpose.msra.mxu0 0
    %472 = vmatprep.subr.bf16.mxu0 0
    %473 = vmatpush1.bf16.xpose.msra.mxu0 0
    %474 = vmatprep.subr.bf16.mxu0 0
    %475 = vmatpush1.bf16.xpose.msra.mxu0 0
    %476 = vmatprep.subr.bf16.mxu0 0
    %477 = vmatpush1.bf16.xpose.msra.mxu0 0
    %478 = vmatprep.subr.bf16.mxu0 0
    %479 = vmatpush1.bf16.xpose.msra.mxu0 0
    %480 = vmatprep.subr.bf16.mxu0 0
    %481 = vmatpush1.bf16.xpose.msra.mxu0 0
    %482 = vmatprep.subr.bf16.mxu0 0
    %483 = vmatpush1.bf16.xpose.msra.mxu0 0
    %484 = vmatprep.mubr.bf16.mxu0 0
    %485 = vmatmul.mubr.bf16.gmra.mrb[0].mxu0 %v447
    %v486 = vpop.f32.mrb[0].mxu0
    %v487 = vadd.f32 0.0, %v486
    %v488 = vpop.f32.mrb[0].mxu0
    %v489 = vpop.f32.mrb[0].mxu0
    %v490 = vpop.f32.mrb[0].mxu0
    %491 = vdwg.mxu0
    %v492 = vmul.f32 %v437, 0.35355338
    %v493 = vmul.f32 %v487, 0.35355338
    %v494 = vsel %vm174, %v492, -inf
    %495 = vmax.xlane.f32.xlu0 %v494
    %v496 = vpop.xlane.xlu0 %495
    %v497 = vsel %vm174, %v493, -inf
    %498 = vmax.xlane.f32.xlu0 %v497
    %v499 = vpop.xlane.xlu0 %498
    %v500 = vsub.f32 %v492, %v496
    %v501 = vsub.f32 %v493, %v499
    %v502 = vmul.f32 %v500, 1.442695
    %v503 = vpow.pop %v502
    %v504 = vmul.f32 %v501, 1.442695
    %v505 = vpow.pop %v504
    %v506 = vsel %vm174, %v503, 0.0
    %507 = vadd.xlane.f32.xlu0 %v506
    %v508 = vpop.xlane.xlu0 %507
    %v509 = vsel %vm174, %v505, 0.0
    %510 = vadd.xlane.f32.xlu0 %v509
    %v511 = vpop.xlane.xlu0 %510
    %v512 = vrcp.pop %v508
    %v513 = vrcp.pop %v511
    %v514 = vmul.f32 %v503, %v512
    %v515 = vmul.f32 %v505, %v513
    %v516 = vpack.c.bf16 %v514, %v514
    %v517 = vpack.c.bf16 %v515, %v515
    %518 = vrot.lane.b32.xlu0 %v170, 56
    %v519 = vpop.permute.xlu0 %518
    %v521 = vsel %vm174, %v516, 0
    %v524 = vsel %vm300, %v519, 0
    %526 = vmatprep.subr.bf16.mxu0 0
    %527 = vmatpush1.bf16.msra.mxu0 %v524
    %528 = vmatprep.subr.bf16.mxu0 0
    %529 = vmatpush1.bf16.msra.mxu0 0
    %530 = vmatprep.subr.bf16.mxu0 0
    %531 = vmatpush1.bf16.msra.mxu0 0
    %532 = vmatprep.subr.bf16.mxu0 0
    %533 = vmatpush1.bf16.msra.mxu0 0
    %534 = vmatprep.subr.bf16.mxu0 0
    %535 = vmatpush1.bf16.msra.mxu0 0
    %536 = vmatprep.subr.bf16.mxu0 0
    %537 = vmatpush1.bf16.msra.mxu0 0
    %538 = vmatprep.subr.bf16.mxu0 0
    %539 = vmatpush1.bf16.msra.mxu0 0
    %540 = vmatprep.subr.bf16.mxu0 0
    %541 = vmatpush1.bf16.msra.mxu0 0
    %542 = vmatprep.subr.bf16.mxu0 0
    %543 = vmatpush1.bf16.msra.mxu0 0
    %544 = vmatprep.subr.bf16.mxu0 0
    %545 = vmatpush1.bf16.msra.mxu0 0
    %546 = vmatprep.subr.bf16.mxu0 0
    %547 = vmatpush1.bf16.msra.mxu0 0
    %548 = vmatprep.subr.bf16.mxu0 0
    %549 = vmatpush1.bf16.msra.mxu0 0
    %550 = vmatprep.subr.bf16.mxu0 0
    %551 = vmatpush1.bf16.msra.mxu0 0
    %552 = vmatprep.subr.bf16.mxu0 0
    %553 = vmatpush1.bf16.msra.mxu0 0
    %554 = vmatprep.subr.bf16.mxu0 0
    %555 = vmatpush1.bf16.msra.mxu0 0
    %556 = vmatprep.subr.bf16.mxu0 0
    %557 = vmatpush1.bf16.msra.mxu0 0
    %558 = vmatprep.mubr.bf16.mxu0 0
    %559 = vmatmul.mubr.bf16.gmra.mrb[0].mxu0 %v521
    %v560 = vpop.f32.mrb[0].mxu0
    %v561 = vadd.f32 0.0, %v560
    %v562 = vpop.f32.mrb[0].mxu0
    %v563 = vpop.f32.mrb[0].mxu0
    %v564 = vpop.f32.mrb[0].mxu0
    %565 = vdwg.mxu0
    %566 = vrot.lane.b32.xlu0 %v171, 56
    %v567 = vpop.permute.xlu0 %566
    %v569 = vsel %vm174, %v517, 0
    %v572 = vsel %vm300, %v567, 0
    %574 = vmatprep.subr.bf16.mxu0 0
    %575 = vmatpush1.bf16.msra.mxu0 %v572
    %576 = vmatprep.subr.bf16.mxu0 0
    %577 = vmatpush1.bf16.msra.mxu0 0
    %578 = vmatprep.subr.bf16.mxu0 0
    %579 = vmatpush1.bf16.msra.mxu0 0
    %580 = vmatprep.subr.bf16.mxu0 0
    %581 = vmatpush1.bf16.msra.mxu0 0
    %582 = vmatprep.subr.bf16.mxu0 0
    %583 = vmatpush1.bf16.msra.mxu0 0
    %584 = vmatprep.subr.bf16.mxu0 0
    %585 = vmatpush1.bf16.msra.mxu0 0
    %586 = vmatprep.subr.bf16.mxu0 0
    %587 = vmatpush1.bf16.msra.mxu0 0
    %588 = vmatprep.subr.bf16.mxu0 0
    %589 = vmatpush1.bf16.msra.mxu0 0
    %590 = vmatprep.subr.bf16.mxu0 0
    %591 = vmatpush1.bf16.msra.mxu0 0
    %592 = vmatprep.subr.bf16.mxu0 0
    %593 = vmatpush1.bf16.msra.mxu0 0
    %594 = vmatprep.subr.bf16.mxu0 0
    %595 = vmatpush1.bf16.msra.mxu0 0
    %596 = vmatprep.subr.bf16.mxu0 0
    %597 = vmatpush1.bf16.msra.mxu0 0
    %598 = vmatprep.subr.bf16.mxu0 0
    %599 = vmatpush1.bf16.msra.mxu0 0
    %600 = vmatprep.subr.bf16.mxu0 0
    %601 = vmatpush1.bf16.msra.mxu0 0
    %602 = vmatprep.subr.bf16.mxu0 0
    %603 = vmatpush1.bf16.msra.mxu0 0
    %604 = vmatprep.subr.bf16.mxu0 0
    %605 = vmatpush1.bf16.msra.mxu0 0
    %606 = vmatprep.mubr.bf16.mxu0 0
    %607 = vmatmul.mubr.bf16.gmra.mrb[0].mxu0 %v569
    %v608 = vpop.f32.mrb[0].mxu0
    %v609 = vadd.f32 0.0, %v608
    %v610 = vpop.f32.mrb[0].mxu0
    %v611 = vpop.f32.mrb[0].mxu0
    %v612 = vpop.f32.mrb[0].mxu0
    %613 = vdwg.mxu0
    %614 = vrot.lane.b32.xlu0 %v170, 112
    %v615 = vpop.permute.xlu0 %614
    %616 = vrot.lane.b32.xlu0 %v170, 80
    %v617 = vpop.permute.xlu0 %616
    %v619 = vsel %vm174, %v615, 0
    %v622 = vsel %vm174, %v617, 0
    %624 = vmatprep.subr.bf16.mxu0 0
    %625 = vmatpush1.bf16.xpose.msra.mxu0 %v622
    %626 = vmatprep.subr.bf16.mxu0 0
    %627 = vmatpush1.bf16.xpose.msra.mxu0 0
    %628 = vmatprep.subr.bf16.mxu0 0
    %629 = vmatpush1.bf16.xpose.msra.mxu0 0
    %630 = vmatprep.subr.bf16.mxu0 0
    %631 = vmatpush1.bf16.xpose.msra.mxu0 0
    %632 = vmatprep.subr.bf16.mxu0 0
    %633 = vmatpush1.bf16.xpose.msra.mxu0 0
    %634 = vmatprep.subr.bf16.mxu0 0
    %635 = vmatpush1.bf16.xpose.msra.mxu0 0
    %636 = vmatprep.subr.bf16.mxu0 0
    %637 = vmatpush1.bf16.xpose.msra.mxu0 0
    %638 = vmatprep.subr.bf16.mxu0 0
    %639 = vmatpush1.bf16.xpose.msra.mxu0 0
    %640 = vmatprep.subr.bf16.mxu0 0
    %641 = vmatpush1.bf16.xpose.msra.mxu0 0
    %642 = vmatprep.subr.bf16.mxu0 0
    %643 = vmatpush1.bf16.xpose.msra.mxu0 0
    %644 = vmatprep.subr.bf16.mxu0 0
    %645 = vmatpush1.bf16.xpose.msra.mxu0 0
    %646 = vmatprep.subr.bf16.mxu0 0
    %647 = vmatpush1.bf16.xpose.msra.mxu0 0
    %648 = vmatprep.subr.bf16.mxu0 0
    %649 = vmatpush1.bf16.xpose.msra.mxu0 0
    %650 = vmatprep.subr.bf16.mxu0 0
    %651 = vmatpush1.bf16.xpose.msra.mxu0 0
    %652 = vmatprep.subr.bf16.mxu0 0
    %653 = vmatpush1.bf16.xpose.msra.mxu0 0
    %654 = vmatprep.subr.bf16.mxu0 0
    %655 = vmatpush1.bf16.xpose.msra.mxu0 0
    %656 = vmatprep.mubr.bf16.mxu0 0
    %657 = vmatmul.mubr.bf16.gmra.mrb[0].mxu0 %v619
    %v658 = vpop.f32.mrb[0].mxu0
    %v659 = vadd.f32 0.0, %v658
    %v660 = vpop.f32.mrb[0].mxu0
    %v661 = vpop.f32.mrb[0].mxu0
    %v662 = vpop.f32.mrb[0].mxu0
    %663 = vdwg.mxu0
    %664 = vrot.lane.b32.xlu0 %v171, 112
    %v665 = vpop.permute.xlu0 %664
    %666 = vrot.lane.b32.xlu0 %v171, 80
    %v667 = vpop.permute.xlu0 %666
    %v669 = vsel %vm174, %v665, 0
    %v672 = vsel %vm174, %v667, 0
    %674 = vmatprep.subr.bf16.mxu0 0
    %675 = vmatpush1.bf16.xpose.msra.mxu0 %v672
    %676 = vmatprep.subr.bf16.mxu0 0
    %677 = vmatpush1.bf16.xpose.msra.mxu0 0
    %678 = vmatprep.subr.bf16.mxu0 0
    %679 = vmatpush1.bf16.xpose.msra.mxu0 0
    %680 = vmatprep.subr.bf16.mxu0 0
    %681 = vmatpush1.bf16.xpose.msra.mxu0 0
    %682 = vmatprep.subr.bf16.mxu0 0
    %683 = vmatpush1.bf16.xpose.msra.mxu0 0
    %684 = vmatprep.subr.bf16.mxu0 0
    %685 = vmatpush1.bf16.xpose.msra.mxu0 0
    %686 = vmatprep.subr.bf16.mxu0 0
    %687 = vmatpush1.bf16.xpose.msra.mxu0 0
    %688 = vmatprep.subr.bf16.mxu0 0
    %689 = vmatpush1.bf16.xpose.msra.mxu0 0
    %690 = vmatprep.subr.bf16.mxu0 0
    %691 = vmatpush1.bf16.xpose.msra.mxu0 0
    %692 = vmatprep.subr.bf16.mxu0 0
    %693 = vmatpush1.bf16.xpose.msra.mxu0 0
    %694 = vmatprep.subr.bf16.mxu0 0
    %695 = vmatpush1.bf16.xpose.msra.mxu0 0
    %696 = vmatprep.subr.bf16.mxu0 0
    %697 = vmatpush1.bf16.xpose.msra.mxu0 0
    %698 = vmatprep.subr.bf16.mxu0 0
    %699 = vmatpush1.bf16.xpose.msra.mxu0 0
    %700 = vmatprep.subr.bf16.mxu0 0
    %701 = vmatpush1.bf16.xpose.msra.mxu0 0
    %702 = vmatprep.subr.bf16.mxu0 0
    %703 = vmatpush1.bf16.xpose.msra.mxu0 0
    %704 = vmatprep.subr.bf16.mxu0 0
    %705 = vmatpush1.bf16.xpose.msra.mxu0 0
    %706 = vmatprep.mubr.bf16.mxu0 0
    %707 = vmatmul.mubr.bf16.gmra.mrb[0].mxu0 %v669
    %v708 = vpop.f32.mrb[0].mxu0
    %v709 = vadd.f32 0.0, %v708
    %v710 = vpop.f32.mrb[0].mxu0
    %v711 = vpop.f32.mrb[0].mxu0
    %v712 = vpop.f32.mrb[0].mxu0
    %713 = vdwg.mxu0
    %v714 = vmul.f32 %v659, 0.35355338
    %v715 = vmul.f32 %v709, 0.35355338
    %v716 = vsel %vm174, %v714, -inf
    %717 = vmax.xlane.f32.xlu0 %v716
    %v718 = vpop.xlane.xlu0 %717
    %v719 = vsel %vm174, %v715, -inf
    %720 = vmax.xlane.f32.xlu0 %v719
    %v721 = vpop.xlane.xlu0 %720
    %v722 = vsub.f32 %v714, %v718
    %v723 = vsub.f32 %v715, %v721
    %v724 = vmul.f32 %v722, 1.442695
    %v725 = vpow.pop %v724
    %v726 = vmul.f32 %v723, 1.442695
    %v727 = vpow.pop %v726
    %v728 = vsel %vm174, %v725, 0.0
    %729 = vadd.xlane.f32.xlu0 %v728
    %v730 = vpop.xlane.xlu0 %729
    %v731 = vsel %vm174, %v727, 0.0
    %732 = vadd.xlane.f32.xlu0 %v731
    %v733 = vpop.xlane.xlu0 %732
    %v734 = vrcp.pop %v730
    %v735 = vrcp.pop %v733
    %v736 = vmul.f32 %v725, %v734
    %v737 = vmul.f32 %v727, %v735
    %v738 = vpack.c.bf16 %v736, %v736
    %v739 = vpack.c.bf16 %v737, %v737
    %740 = vrot.lane.b32.xlu0 %v170, 48
    %v741 = vpop.permute.xlu0 %740
    %v743 = vsel %vm174, %v738, 0
    %v746 = vsel %vm300, %v741, 0
    %748 = vmatprep.subr.bf16.mxu0 0
    %749 = vmatpush1.bf16.msra.mxu0 %v746
    %750 = vmatprep.subr.bf16.mxu0 0
    %751 = vmatpush1.bf16.msra.mxu0 0
    %752 = vmatprep.subr.bf16.mxu0 0
    %753 = vmatpush1.bf16.msra.mxu0 0
    %754 = vmatprep.subr.bf16.mxu0 0
    %755 = vmatpush1.bf16.msra.mxu0 0
    %756 = vmatprep.subr.bf16.mxu0 0
    %757 = vmatpush1.bf16.msra.mxu0 0
    %758 = vmatprep.subr.bf16.mxu0 0
    %759 = vmatpush1.bf16.msra.mxu0 0
    %760 = vmatprep.subr.bf16.mxu0 0
    %761 = vmatpush1.bf16.msra.mxu0 0
    %762 = vmatprep.subr.bf16.mxu0 0
    %763 = vmatpush1.bf16.msra.mxu0 0
    %764 = vmatprep.subr.bf16.mxu0 0
    %765 = vmatpush1.bf16.msra.mxu0 0
    %766 = vmatprep.subr.bf16.mxu0 0
    %767 = vmatpush1.bf16.msra.mxu0 0
    %768 = vmatprep.subr.bf16.mxu0 0
    %769 = vmatpush1.bf16.msra.mxu0 0
    %770 = vmatprep.subr.bf16.mxu0 0
    %771 = vmatpush1.bf16.msra.mxu0 0
    %772 = vmatprep.subr.bf16.mxu0 0
    %773 = vmatpush1.bf16.msra.mxu0 0
    %774 = vmatprep.subr.bf16.mxu0 0
    %775 = vmatpush1.bf16.msra.mxu0 0
    %776 = vmatprep.subr.bf16.mxu0 0
    %777 = vmatpush1.bf16.msra.mxu0 0
    %778 = vmatprep.subr.bf16.mxu0 0
    %779 = vmatpush1.bf16.msra.mxu0 0
    %780 = vmatprep.mubr.bf16.mxu0 0
    %781 = vmatmul.mubr.bf16.gmra.mrb[0].mxu0 %v743
    %v782 = vpop.f32.mrb[0].mxu0
    %v783 = vadd.f32 0.0, %v782
    %v784 = vpop.f32.mrb[0].mxu0
    %v785 = vpop.f32.mrb[0].mxu0
    %v786 = vpop.f32.mrb[0].mxu0
    %787 = vdwg.mxu0
    %788 = vrot.lane.b32.xlu0 %v171, 48
    %v789 = vpop.permute.xlu0 %788
    %v791 = vsel %vm174, %v739, 0
    %v794 = vsel %vm300, %v789, 0
    %796 = vmatprep.subr.bf16.mxu0 0
    %797 = vmatpush1.bf16.msra.mxu0 %v794
    %798 = vmatprep.subr.bf16.mxu0 0
    %799 = vmatpush1.bf16.msra.mxu0 0
    %800 = vmatprep.subr.bf16.mxu0 0
    %801 = vmatpush1.bf16.msra.mxu0 0
    %802 = vmatprep.subr.bf16.mxu0 0
    %803 = vmatpush1.bf16.msra.mxu0 0
    %804 = vmatprep.subr.bf16.mxu0 0
    %805 = vmatpush1.bf16.msra.mxu0 0
    %806 = vmatprep.subr.bf16.mxu0 0
    %807 = vmatpush1.bf16.msra.mxu0 0
    %808 = vmatprep.subr.bf16.mxu0 0
    %809 = vmatpush1.bf16.msra.mxu0 0
    %810 = vmatprep.subr.bf16.mxu0 0
    %811 = vmatpush1.bf16.msra.mxu0 0
    %812 = vmatprep.subr.bf16.mxu0 0
    %813 = vmatpush1.bf16.msra.mxu0 0
    %814 = vmatprep.subr.bf16.mxu0 0
    %815 = vmatpush1.bf16.msra.mxu0 0
    %816 = vmatprep.subr.bf16.mxu0 0
    %817 = vmatpush1.bf16.msra.mxu0 0
    %818 = vmatprep.subr.bf16.mxu0 0
    %819 = vmatpush1.bf16.msra.mxu0 0
    %820 = vmatprep.subr.bf16.mxu0 0
    %821 = vmatpush1.bf16.msra.mxu0 0
    %822 = vmatprep.subr.bf16.mxu0 0
    %823 = vmatpush1.bf16.msra.mxu0 0
    %824 = vmatprep.subr.bf16.mxu0 0
    %825 = vmatpush1.bf16.msra.mxu0 0
    %826 = vmatprep.subr.bf16.mxu0 0
    %827 = vmatpush1.bf16.msra.mxu0 0
    %828 = vmatprep.mubr.bf16.mxu0 0
    %829 = vmatmul.mubr.bf16.gmra.mrb[0].mxu0 %v791
    %v830 = vpop.f32.mrb[0].mxu0
    %v831 = vadd.f32 0.0, %v830
    %v832 = vpop.f32.mrb[0].mxu0
    %v833 = vpop.f32.mrb[0].mxu0
    %v834 = vpop.f32.mrb[0].mxu0
    %835 = vdwg.mxu0
    %836 = vrot.lane.b32.xlu0 %v170, 104
    %v837 = vpop.permute.xlu0 %836
    %838 = vrot.lane.b32.xlu0 %v170, 72
    %v839 = vpop.permute.xlu0 %838
    %v841 = vsel %vm174, %v837, 0
    %v844 = vsel %vm174, %v839, 0
    %846 = vmatprep.subr.bf16.mxu0 0
    %847 = vmatpush1.bf16.xpose.msra.mxu0 %v844
    %848 = vmatprep.subr.bf16.mxu0 0
    %849 = vmatpush1.bf16.xpose.msra.mxu0 0
    %850 = vmatprep.subr.bf16.mxu0 0
    %851 = vmatpush1.bf16.xpose.msra.mxu0 0
    %852 = vmatprep.subr.bf16.mxu0 0
    %853 = vmatpush1.bf16.xpose.msra.mxu0 0
    %854 = vmatprep.subr.bf16.mxu0 0
    %855 = vmatpush1.bf16.xpose.msra.mxu0 0
    %856 = vmatprep.subr.bf16.mxu0 0
    %857 = vmatpush1.bf16.xpose.msra.mxu0 0
    %858 = vmatprep.subr.bf16.mxu0 0
    %859 = vmatpush1.bf16.xpose.msra.mxu0 0
    %860 = vmatprep.subr.bf16.mxu0 0
    %861 = vmatpush1.bf16.xpose.msra.mxu0 0
    %862 = vmatprep.subr.bf16.mxu0 0
    %863 = vmatpush1.bf16.xpose.msra.mxu0 0
    %864 = vmatprep.subr.bf16.mxu0 0
    %865 = vmatpush1.bf16.xpose.msra.mxu0 0
    %866 = vmatprep.subr.bf16.mxu0 0
    %867 = vmatpush1.bf16.xpose.msra.mxu0 0
    %868 = vmatprep.subr.bf16.mxu0 0
    %869 = vmatpush1.bf16.xpose.msra.mxu0 0
    %870 = vmatprep.subr.bf16.mxu0 0
    %871 = vmatpush1.bf16.xpose.msra.mxu0 0
    %872 = vmatprep.subr.bf16.mxu0 0
    %873 = vmatpush1.bf16.xpose.msra.mxu0 0
    %874 = vmatprep.subr.bf16.mxu0 0
    %875 = vmatpush1.bf16.xpose.msra.mxu0 0
    %876 = vmatprep.subr.bf16.mxu0 0
    %877 = vmatpush1.bf16.xpose.msra.mxu0 0
    %878 = vmatprep.mubr.bf16.mxu0 0
    %879 = vmatmul.mubr.bf16.gmra.mrb[0].mxu0 %v841
    %v880 = vpop.f32.mrb[0].mxu0
    %v881 = vadd.f32 0.0, %v880
    %v882 = vpop.f32.mrb[0].mxu0
    %v883 = vpop.f32.mrb[0].mxu0
    %v884 = vpop.f32.mrb[0].mxu0
    %885 = vdwg.mxu0
    %886 = vrot.lane.b32.xlu0 %v171, 104
    %v887 = vpop.permute.xlu0 %886
    %888 = vrot.lane.b32.xlu0 %v171, 72
    %v889 = vpop.permute.xlu0 %888
    %v891 = vsel %vm174, %v887, 0
    %v894 = vsel %vm174, %v889, 0
    %896 = vmatprep.subr.bf16.mxu0 0
    %897 = vmatpush1.bf16.xpose.msra.mxu0 %v894
    %898 = vmatprep.subr.bf16.mxu0 0
    %899 = vmatpush1.bf16.xpose.msra.mxu0 0
    %900 = vmatprep.subr.bf16.mxu0 0
    %901 = vmatpush1.bf16.xpose.msra.mxu0 0
    %902 = vmatprep.subr.bf16.mxu0 0
    %903 = vmatpush1.bf16.xpose.msra.mxu0 0
    %904 = vmatprep.subr.bf16.mxu0 0
    %905 = vmatpush1.bf16.xpose.msra.mxu0 0
    %906 = vmatprep.subr.bf16.mxu0 0
    %907 = vmatpush1.bf16.xpose.msra.mxu0 0
    %908 = vmatprep.subr.bf16.mxu0 0
    %909 = vmatpush1.bf16.xpose.msra.mxu0 0
    %910 = vmatprep.subr.bf16.mxu0 0
    %911 = vmatpush1.bf16.xpose.msra.mxu0 0
    %912 = vmatprep.subr.bf16.mxu0 0
    %913 = vmatpush1.bf16.xpose.msra.mxu0 0
    %914 = vmatprep.subr.bf16.mxu0 0
    %915 = vmatpush1.bf16.xpose.msra.mxu0 0
    %916 = vmatprep.subr.bf16.mxu0 0
    %917 = vmatpush1.bf16.xpose.msra.mxu0 0
    %918 = vmatprep.subr.bf16.mxu0 0
    %919 = vmatpush1.bf16.xpose.msra.mxu0 0
    %920 = vmatprep.subr.bf16.mxu0 0
    %921 = vmatpush1.bf16.xpose.msra.mxu0 0
    %922 = vmatprep.subr.bf16.mxu0 0
    %923 = vmatpush1.bf16.xpose.msra.mxu0 0
    %924 = vmatprep.subr.bf16.mxu0 0
    %925 = vmatpush1.bf16.xpose.msra.mxu0 0
    %926 = vmatprep.subr.bf16.mxu0 0
    %927 = vmatpush1.bf16.xpose.msra.mxu0 0
    %928 = vmatprep.mubr.bf16.mxu0 0
    %929 = vmatmul.mubr.bf16.gmra.mrb[0].mxu0 %v891
    %v930 = vpop.f32.mrb[0].mxu0
    %v931 = vadd.f32 0.0, %v930
    %v932 = vpop.f32.mrb[0].mxu0
    %v933 = vpop.f32.mrb[0].mxu0
    %v934 = vpop.f32.mrb[0].mxu0
    %935 = vdwg.mxu0
    %v936 = vmul.f32 %v881, 0.35355338
    %v937 = vmul.f32 %v931, 0.35355338
    %v938 = vsel %vm174, %v936, -inf
    %939 = vmax.xlane.f32.xlu0 %v938
    %v940 = vpop.xlane.xlu0 %939
    %v941 = vsel %vm174, %v937, -inf
    %942 = vmax.xlane.f32.xlu0 %v941
    %v943 = vpop.xlane.xlu0 %942
    %v944 = vsub.f32 %v936, %v940
    %v945 = vsub.f32 %v937, %v943
    %v946 = vmul.f32 %v944, 1.442695
    %v947 = vpow.pop %v946
    %v948 = vmul.f32 %v945, 1.442695
    %v949 = vpow.pop %v948
    %v950 = vsel %vm174, %v947, 0.0
    %951 = vadd.xlane.f32.xlu0 %v950
    %v952 = vpop.xlane.xlu0 %951
    %v953 = vsel %vm174, %v949, 0.0
    %954 = vadd.xlane.f32.xlu0 %v953
    %v955 = vpop.xlane.xlu0 %954
    %v956 = vrcp.pop %v952
    %v957 = vrcp.pop %v955
    %v958 = vmul.f32 %v947, %v956
    %v959 = vmul.f32 %v949, %v957
    %v960 = vpack.c.bf16 %v958, %v958
    %v961 = vpack.c.bf16 %v959, %v959
    %962 = vrot.lane.b32.xlu0 %v170, 40
    %v963 = vpop.permute.xlu0 %962
    %v965 = vsel %vm174, %v960, 0
    %v968 = vsel %vm300, %v963, 0
    %970 = vmatprep.subr.bf16.mxu0 0
    %971 = vmatpush1.bf16.msra.mxu0 %v968
    %972 = vmatprep.subr.bf16.mxu0 0
    %973 = vmatpush1.bf16.msra.mxu0 0
    %974 = vmatprep.subr.bf16.mxu0 0
    %975 = vmatpush1.bf16.msra.mxu0 0
    %976 = vmatprep.subr.bf16.mxu0 0
    %977 = vmatpush1.bf16.msra.mxu0 0
    %978 = vmatprep.subr.bf16.mxu0 0
    %979 = vmatpush1.bf16.msra.mxu0 0
    %980 = vmatprep.subr.bf16.mxu0 0
    %981 = vmatpush1.bf16.msra.mxu0 0
    %982 = vmatprep.subr.bf16.mxu0 0
    %983 = vmatpush1.bf16.msra.mxu0 0
    %984 = vmatprep.subr.bf16.mxu0 0
    %985 = vmatpush1.bf16.msra.mxu0 0
    %986 = vmatprep.subr.bf16.mxu0 0
    %987 = vmatpush1.bf16.msra.mxu0 0
    %988 = vmatprep.subr.bf16.mxu0 0
    %989 = vmatpush1.bf16.msra.mxu0 0
    %990 = vmatprep.subr.bf16.mxu0 0
    %991 = vmatpush1.bf16.msra.mxu0 0
    %992 = vmatprep.subr.bf16.mxu0 0
    %993 = vmatpush1.bf16.msra.mxu0 0
    %994 = vmatprep.subr.bf16.mxu0 0
    %995 = vmatpush1.bf16.msra.mxu0 0
    %996 = vmatprep.subr.bf16.mxu0 0
    %997 = vmatpush1.bf16.msra.mxu0 0
    %998 = vmatprep.subr.bf16.mxu0 0
    %999 = vmatpush1.bf16.msra.mxu0 0
    %1000 = vmatprep.subr.bf16.mxu0 0
    %1001 = vmatpush1.bf16.msra.mxu0 0
    %1002 = vmatprep.mubr.bf16.mxu0 0
    %1003 = vmatmul.mubr.bf16.gmra.mrb[0].mxu0 %v965
    %v1004 = vpop.f32.mrb[0].mxu0
    %v1005 = vadd.f32 0.0, %v1004
    %v1006 = vpop.f32.mrb[0].mxu0
    %v1007 = vpop.f32.mrb[0].mxu0
    %v1008 = vpop.f32.mrb[0].mxu0
    %1009 = vdwg.mxu0
    %1010 = vrot.lane.b32.xlu0 %v171, 40
    %v1011 = vpop.permute.xlu0 %1010
    %v1013 = vsel %vm174, %v961, 0
    %v1016 = vsel %vm300, %v1011, 0
    %1018 = vmatprep.subr.bf16.mxu0 0
    %1019 = vmatpush1.bf16.msra.mxu0 %v1016
    %1020 = vmatprep.subr.bf16.mxu0 0
    %1021 = vmatpush1.bf16.msra.mxu0 0
    %1022 = vmatprep.subr.bf16.mxu0 0
    %1023 = vmatpush1.bf16.msra.mxu0 0
    %1024 = vmatprep.subr.bf16.mxu0 0
    %1025 = vmatpush1.bf16.msra.mxu0 0
    %1026 = vmatprep.subr.bf16.mxu0 0
    %1027 = vmatpush1.bf16.msra.mxu0 0
    %1028 = vmatprep.subr.bf16.mxu0 0
    %1029 = vmatpush1.bf16.msra.mxu0 0
    %1030 = vmatprep.subr.bf16.mxu0 0
    %1031 = vmatpush1.bf16.msra.mxu0 0
    %1032 = vmatprep.subr.bf16.mxu0 0
    %1033 = vmatpush1.bf16.msra.mxu0 0
    %1034 = vmatprep.subr.bf16.mxu0 0
    %1035 = vmatpush1.bf16.msra.mxu0 0
    %1036 = vmatprep.subr.bf16.mxu0 0
    %1037 = vmatpush1.bf16.msra.mxu0 0
    %1038 = vmatprep.subr.bf16.mxu0 0
    %1039 = vmatpush1.bf16.msra.mxu0 0
    %1040 = vmatprep.subr.bf16.mxu0 0
    %1041 = vmatpush1.bf16.msra.mxu0 0
    %1042 = vmatprep.subr.bf16.mxu0 0
    %1043 = vmatpush1.bf16.msra.mxu0 0
    %1044 = vmatprep.subr.bf16.mxu0 0
    %1045 = vmatpush1.bf16.msra.mxu0 0
    %1046 = vmatprep.subr.bf16.mxu0 0
    %1047 = vmatpush1.bf16.msra.mxu0 0
    %1048 = vmatprep.subr.bf16.mxu0 0
    %1049 = vmatpush1.bf16.msra.mxu0 0
    %1050 = vmatprep.mubr.bf16.mxu0 0
    %1051 = vmatmul.mubr.bf16.gmra.mrb[0].mxu0 %v1013
    %v1052 = vpop.f32.mrb[0].mxu0
    %v1053 = vadd.f32 0.0, %v1052
    %v1054 = vpop.f32.mrb[0].mxu0
    %v1055 = vpop.f32.mrb[0].mxu0
    %v1056 = vpop.f32.mrb[0].mxu0
    %1057 = vdwg.mxu0
    %1060 = vrot.lane.b32.xlu0 %v561, 8
    %v1061 = vpop.permute.xlu0 %1060
    %1062 = vrot.lane.b32.xlu0 %v609, 8
    %v1063 = vpop.permute.xlu0 %1062
    %1068 = vrot.lane.b32.xlu0 %v783, 16
    %v1069 = vpop.permute.xlu0 %1068
    %1070 = vrot.lane.b32.xlu0 %v831, 16
    %v1071 = vpop.permute.xlu0 %1070
    %1076 = vrot.lane.b32.xlu0 %v1005, 24
    %v1077 = vpop.permute.xlu0 %1076
    %1078 = vrot.lane.b32.xlu0 %v1053, 24
    %v1079 = vpop.permute.xlu0 %1078
    %v1082 = vsel %vm174, %v339, %v1061
    %v1083 = vsel %vm174, %v387, %v1063
    %vm1084 = vcmask 130048
    %v1085 = vsel %vm1084, %v1082, %v1069
    %v1086 = vsel %vm1084, %v1083, %v1071
    %vm1087 = vcmask 195584
    %v1088 = vsel %vm1087, %v1085, %v1077
    %v1089 = vsel %vm1087, %v1086, %v1079
    %1092 = vrot.lane.b32.xlu0 %v63, 32
    %v1093 = vpop.permute.xlu0 %1092
    %1094 = vrot.lane.b32.xlu0 %v64, 32
    %v1095 = vpop.permute.xlu0 %1094
    %vm1098 = vcmask 261120
    %v1099 = vsel %vm1098, %v1088, %v1093
    %v1100 = vsel %vm1098, %v1089, %v1095
    %v1101 = vpack.c.bf16 %v1100, %v1099
    %v1102 = vld [vmem:[#allocation7] sm:$0xf]
    %v1103 = vld [vmem:[#allocation7 + $0x4] sm:$0xf]
    %v1104 = vld [vmem:[#allocation7 + $0x8] sm:$0xf]
    %v1105 = vld [vmem:[#allocation7 + $0xc] sm:$0xf]
    %v1106 = vld [vmem:[#allocation7 + $0x10] sm:$0xf]
    %v1107 = vld [vmem:[#allocation7 + $0x14] sm:$0xf]
    %v1108 = vld [vmem:[#allocation7 + $0x18] sm:$0xf]
    %v1109 = vld [vmem:[#allocation7 + $0x1c] sm:$0xf]
    %v1110 = vld [vmem:[%s4] sm:$0x1]
    %v1112 = vlaneseq
    %v1113 = vshrl.u32 %v1112, 7
    %v1114 = vsub.s32 0, %v1113
    %v1115 = vrot.slane %v1110, %v1114
    %v1125 = vunpack.c.l.b16 %v1102
    %v1126 = vunpack.c.l.b16 %v1103
    %v1127 = vunpack.c.l.b16 %v1104
    %v1128 = vunpack.c.l.b16 %v1105
    %v1129 = vunpack.c.l.b16 %v1106
    %v1130 = vunpack.c.l.b16 %v1107
    %v1131 = vunpack.c.l.b16 %v1108
    %v1132 = vunpack.c.l.b16 %v1109
    %v1133 = vpack.c.b16 %v1126, %v1125
    %v1134 = vpack.c.b16 %v1128, %v1127
    %v1135 = vpack.c.b16 %v1130, %v1129
    %v1136 = vpack.c.b16 %v1132, %v1131
    %vm1141 = vcmask 523264
    %v1143 = vsel %vm1141, %v1101, 0
    %1145 = vmatprep.subr.bf16.mxu0 0
    %1146 = vmatpush1.bf16.msra.mxu0 %v1133
    %1147 = vmatprep.subr.bf16.mxu0 0
    %1148 = vmatpush1.bf16.msra.mxu0 %v1134
    %1149 = vmatprep.subr.bf16.mxu0 0
    %1150 = vmatpush1.bf16.msra.mxu0 %v1135
    %1151 = vmatprep.subr.bf16.mxu0 0
    %1152 = vmatpush1.bf16.msra.mxu0 %v1136
    %1153 = vmatprep.subr.bf16.mxu0 0
    %1154 = vmatpush1.bf16.msra.mxu0 0
    %1155 = vmatprep.subr.bf16.mxu0 0
    %1156 = vmatpush1.bf16.msra.mxu0 0
    %1157 = vmatprep.subr.bf16.mxu0 0
    %1158 = vmatpush1.bf16.msra.mxu0 0
    %1159 = vmatprep.subr.bf16.mxu0 0
    %1160 = vmatpush1.bf16.msra.mxu0 0
    %1161 = vmatprep.subr.bf16.mxu0 0
    %1162 = vmatpush1.bf16.msra.mxu0 0
    %1163 = vmatprep.subr.bf16.mxu0 0
    %1164 = vmatpush1.bf16.msra.mxu0 0
    %1165 = vmatprep.subr.bf16.mxu0 0
    %1166 = vmatpush1.bf16.msra.mxu0 0
    %1167 = vmatprep.subr.bf16.mxu0 0
    %1168 = vmatpush1.bf16.msra.mxu0 0
    %1169 = vmatprep.subr.bf16.mxu0 0
    %1170 = vmatpush1.bf16.msra.mxu0 0
    %1171 = vmatprep.subr.bf16.mxu0 0
    %1172 = vmatpush1.bf16.msra.mxu0 0
    %1173 = vmatprep.subr.bf16.mxu0 0
    %1174 = vmatpush1.bf16.msra.mxu0 0
    %1175 = vmatprep.subr.bf16.mxu0 0
    %1176 = vmatpush1.bf16.msra.mxu0 0
    %1177 = vmatprep.mubr.bf16.mxu0 0
    %1178 = vmatmul.mubr.bf16.gmra.mrb[0].mxu0 %v1143
    %v1179 = vpop.f32.mrb[0].mxu0
    %v1180 = vadd.f32 %v1115, %v1179
    %v1181 = vpop.f32.mrb[0].mxu0
    %v1182 = vpop.f32.mrb[0].mxu0
    %v1183 = vadd.f32 %v1115, %v1182
    %v1184 = vpop.f32.mrb[0].mxu0
    %1185 = vdwg.mxu0
    %v1186 = vxor.u32 %v1180, 2147483648
    %v1187 = vxor.u32 %v1183, 2147483648
    %v1188 = vmul.f32 %v1186, 1.442695
    %v1189 = vpow.pop %v1188
    %v1190 = vmul.f32 %v1187, 1.442695
    %v1191 = vpow.pop %v1190
    %v1192 = vadd.f32 %v1189, 1.0
    %v1193 = vadd.f32 %v1191, 1.0
    %v1194 = vrcp.pop %v1192
    %v1195 = vmul.f32 1.0, %v1194
    %v1196 = vrcp.pop %v1193
    %v1197 = vmul.f32 1.0, %v1196
    %1200 = vrot.lane.b32.xlu0 %v1180, 96
    %v1201 = vpop.permute.xlu0 %1200
    %1202 = vrot.lane.b32.xlu0 %v1183, 96
    %v1203 = vpop.permute.xlu0 %1202
    %v1206 = vmul.f32 %v1195, %v1201
    %v1207 = vmul.f32 %v1197, %v1203
    %1208 = vst.msk [vmem:[#allocation8] sm:$0xff] %vm1098, %v1206
    %1209 = vst.msk [vmem:[#allocation8 + $0x8] sm:$0xff] %vm1098, %v1207
    // Predicated region
    $region34: #{tpu_custom_call.1} parent=1 // pred_check
      _
    $region35: #{tpu_custom_call.1} parent=1 // pred_check_branch
      %1211 = sbr.rel (0) target = $region37
    $region36: #{tpu_custom_call.1} parent=1 // pred_region
      %s1213 = ssub.s32 256, 256
      %1214 = vsyncadd [#allocation4], %s1213
      %s1215 = sshll.u32 [#allocation8], 4
      %s1216 = int_to_ptr.vmem [resolvable:$true] %s1215
      %1221 = dma.vmem_to_hbm [thread:$0]  %s1216, 256, %s5, [#allocation4], 128, 128, 8
    $region37: #{tpu_custom_call.1} parent=1 // pred_fallthru
      _
    // Predicated region
    $region38: #{tpu_custom_call.1} parent=1 // pred_check
      _
    $region39: #{tpu_custom_call.1} parent=1 // pred_check_branch
      %1223 = sbr.rel (0) target = $region41
    $region40: #{tpu_custom_call.1} parent=1 // pred_region
      %1224 = dma.done [#allocation4], 256
    $region41: #{tpu_custom_call.1} parent=1 // pred_fallthru
      _
    %1225 = vsyncpa [#allocation3], 1
    %1226 = vsyncpa [#allocation6], 1
    %1227 = vsyncpa [#allocation4], 1

</llo_original>
